<compile_context>
chip_gen: v7x
topology: tpu7x:2x2x1
jax: 0.10.0
libtpu: 0.0.40
codegen_flags: <defaults>
</compile_context>

<pallas_src>
import functools

import jax
import jax.numpy as jnp
from jax.experimental import pallas as pl
from jax.experimental.pallas import tpu as pltpu


def _straight_through_kernel(x_ref, o_ref, flag_ref):
    # StraightThrough.forward: o = x.  The output buffer *is* the input buffer
    # (input_output_aliases={0: 0}), so no data movement is needed.  Write a
    # single scalar to SMEM scratch as a guaranteed-lowerable no-op body.
    del x_ref, o_ref
    flag_ref[0] = jnp.int32(1)


@functools.partial(jax.jit, donate_argnums=0)
def straight_through(x: jax.Array) -> jax.Array:
    """Identity forward (StraightThrough) as a zero-copy aliased Pallas call.

    The argument is donated so the aliased output can reuse its buffer with no
    defensive XLA copy; callers needing `x` afterwards should copy it first.
    """
    if x.size == 0:
        return x
    return pl.pallas_call(
        _straight_through_kernel,
        out_shape=jax.ShapeDtypeStruct(x.shape, x.dtype),
        in_specs=[pl.BlockSpec(memory_space=pl.ANY)],
        out_specs=pl.BlockSpec(memory_space=pl.ANY),
        scratch_shapes=[pltpu.SMEM((1,), jnp.int32)],
        input_output_aliases={0: 0},
        compiler_params=pltpu.CompilerParams(has_side_effects=True),
    )(x)


if __name__ == "__main__":
    key = jax.random.PRNGKey(0)
    # Small NCHW tensor consistent with typical conv activations.
    x = jax.random.normal(key, (2, 4, 16, 16), dtype=jnp.float32)

    # straight_through donates its argument (zero-copy aliased output), so keep
    # an independent copy of the expected values for verification.
    x_expected = jnp.copy(x)
    x_expected = jax.block_until_ready(x_expected)

    y = straight_through(x)
    y = jax.block_until_ready(y)

    assert y.shape == x_expected.shape and y.dtype == x_expected.dtype
    assert bool(jnp.all(y == x_expected))
    print("KERNEL_OK")
</pallas_src>

<mosaic_0001>
module attributes {stable_mosaic.version = 11 : i64} {
  func.func @_straight_through_kernel(%arg0: memref<2x4x16x16xf32, #tpu.memory_space<any>>, %arg1: memref<2x4x16x16xf32, #tpu.memory_space<any>>, %arg2: memref<1xi32, #tpu.memory_space<smem>>) attributes {dimension_semantics = [], scalar_prefetch = 0 : i64, scratch_operands = 1 : i64, tpu.core_type = #tpu.core_type<tc>} {
    %c1_i32 = arith.constant 1 : i32
    %c0 = arith.constant 0 : index
    %0 = memref.load %arg2[%c0] : memref<1xi32, #tpu.memory_space<smem>>
    memref.store %c1_i32, %arg2[%c0] : memref<1xi32, #tpu.memory_space<smem>>
    return
  }
}

</mosaic_0001>

<llo_original>
// kernel: straight_through.1
$region0: #{straight_through.1}
  #allocation0 [shape = 'u32[]', space=smem, size = 0x4, offset = 0x4, fixed_abs, tag = 'smem constant byte address 0x4 - core index']
  #allocation1 [shape = 'u32[144,128]{1,0:T(1,128)}', space=vmem, size = 0x12000, scoped, tag = 'internal scratch']
  #allocation2 [shape = 's32[1]{0:T(128)}', space=smem, size = 0x200, scoped, tag = 'scratch operand']
  %s0 = inlined_call_operand.hbm [shape: f32[2,4,16,16], index: 0, kind: input, shape index: {}, may-alias: {0,1}]
  %s1 = inlined_call_operand.hbm [shape: f32[2,4,16,16], index: 1, kind: output, shape index: {}, may-alias: {0,1}]
  %s2 = sld [smem:[#allocation0]]
  $region2: #{straight_through.1} parent=0
    _
  %s4 = ssub.s32 1, %s2
  %s5 = scalar_select 0, %s4, %s2
  %s6 = scalar_lea.smem [#allocation2], 0
  %7 = sst [smem:[%s6]] 1

</llo_original>
